<compile_context>
chip_gen: v7x
topology: tpu7x:2x2x1
jax: 0.10.0
libtpu: 0.0.40
codegen_flags: <defaults>
</compile_context>

<pallas_src>
import jax
import jax.numpy as jnp
from jax.experimental import pallas as pl
from jax.experimental.pallas import tpu as pltpu


def _gelu_tanh(x):
    # GELU with tanh approximation (matches nn.GELU(approximate='tanh'))
    c = 0.7978845608028654  # sqrt(2/pi)
    return 0.5 * x * (1.0 + jnp.tanh(c * (x + 0.044715 * x * x * x)))


def mlp_kernel(x_ref, wfc_ref, bfc_ref, wproj_ref, bproj_ref, o_ref, acc_ref):
    h = pl.program_id(1)

    @pl.when(h == 0)
    def _():
        acc_ref[...] = jnp.zeros_like(acc_ref)

    # c_fc chunk: (tm, E)bf16 @ (E, th)bf16 -> f32; bias add + GELU in f32.
    hidden = jnp.dot(x_ref[...], wfc_ref[...],
                     preferred_element_type=jnp.float32) + bfc_ref[...]
    hidden = _gelu_tanh(hidden)

    # c_proj chunk: accumulate (tm, th)bf16 @ (th, E)bf16 into the f32 scratch.
    acc_ref[...] += jnp.dot(hidden.astype(jnp.bfloat16), wproj_ref[...],
                            preferred_element_type=jnp.float32)

    @pl.when(h == pl.num_programs(1) - 1)
    def _():
        o_ref[...] = (acc_ref[...] + bproj_ref[...]).astype(o_ref.dtype)


def _pick_tile(total, candidates):
    for c in candidates:
        if c <= total and total % c == 0:
            return c
    return total


def mlp_pallas(x, w_fc, b_fc, w_proj, b_proj, *, tm=None, th=None):
    """x: (M, E). w_fc: (E, 4E). w_proj: (4E, E). Biases 2D: (1, 4E), (1, E)."""
    M, E = x.shape
    H = w_fc.shape[1]
    assert w_fc.shape == (E, H) and w_proj.shape == (H, E)
    assert b_fc.shape == (1, H) and b_proj.shape == (1, E)

    if tm is None:
        tm = _pick_tile(M, (256, 128, 64, 32, 16, 8))
    if th is None:
        th = _pick_tile(H, (512, 384, 256, 128))
    assert M % tm == 0 and H % th == 0

    # bf16 operands for the MXU; accumulation stays f32 inside the kernel.
    x_bf = x.astype(jnp.bfloat16)
    wfc_bf = w_fc.astype(jnp.bfloat16)
    wproj_bf = w_proj.astype(jnp.bfloat16)
    bfc_f32 = b_fc.astype(jnp.float32)
    bproj_f32 = b_proj.astype(jnp.float32)

    grid = (M // tm, H // th)

    # Rough VMEM footprint: double-buffered ins/out (bf16 x/weights, f32 out)
    # + f32 accumulator scratch; give 2x headroom, clamp to [16 MiB, 64 MiB].
    vmem_est = 2 * (tm * E * 2 + E * th * 2 + th * 4 + th * E * 2 + E * 4
                    + tm * E * 4) + tm * E * 4
    vmem_limit = int(min(max(2 * vmem_est, 16 * 1024 * 1024),
                         64 * 1024 * 1024))

    cost = pl.CostEstimate(
        flops=4 * M * E * H,                 # two (M,E,H) matmuls
        transcendentals=M * H,               # one tanh per hidden element
        bytes_accessed=(x_bf.size * 2 + wfc_bf.size * 2 + wproj_bf.size * 2
                        + bfc_f32.size * 4 + bproj_f32.size * 4 + M * E * 4),
    )

    return pl.pallas_call(
        mlp_kernel,
        out_shape=jax.ShapeDtypeStruct((M, E), jnp.float32),
        grid_spec=pltpu.PrefetchScalarGridSpec(
            num_scalar_prefetch=0,
            grid=grid,
            in_specs=[
                pl.BlockSpec((tm, E), lambda i, h: (i, 0)),   # x tile (resident over h)
                pl.BlockSpec((E, th), lambda i, h: (0, h)),   # w_fc column chunk
                pl.BlockSpec((1, th), lambda i, h: (0, h)),   # b_fc chunk
                pl.BlockSpec((th, E), lambda i, h: (h, 0)),   # w_proj row chunk
                pl.BlockSpec((1, E), lambda i, h: (0, 0)),    # b_proj
            ],
            out_specs=pl.BlockSpec((tm, E), lambda i, h: (i, 0)),
            scratch_shapes=[pltpu.VMEM((tm, E), jnp.float32)],
        ),
        compiler_params=pltpu.CompilerParams(
            dimension_semantics=("parallel", "arbitrary"),
            vmem_limit_bytes=vmem_limit,
        ),
        cost_estimate=cost,
    )(x_bf, wfc_bf, bfc_f32, wproj_bf, bproj_f32)


if __name__ == "__main__":
    # Small GPT-style config: emb_dim=128 (lane-dense), batch=2, seq=64 -> M=128.
    B, S, E = 2, 64, 128
    H = 4 * E

    key = jax.random.PRNGKey(0)
    kx, kwfc, kbfc, kwp, kbp = jax.random.split(key, 5)

    x = jax.random.normal(kx, (B, S, E), dtype=jnp.float32)
    # Parameters stored as (in, out) for the x @ W convention.
    w_fc = jax.random.normal(kwfc, (E, H), dtype=jnp.float32) * 0.02
    b_fc = jax.random.normal(kbfc, (1, H), dtype=jnp.float32) * 0.02
    w_proj = jax.random.normal(kwp, (H, E), dtype=jnp.float32) * 0.02
    b_proj = jax.random.normal(kbp, (1, E), dtype=jnp.float32) * 0.02

    x2d = x.reshape(B * S, E)
    # tm=64 / th=256 -> grid (2, 2): exercises both the parallel M axis and the
    # accumulated (arbitrary) H axis even at this small test size. Real widths
    # use the larger auto-picked 128/256-row x 512-wide tiles.
    out2d = mlp_pallas(x2d, w_fc, b_fc, w_proj, b_proj, tm=64, th=256)
    out = out2d.reshape(B, S, E)
    jax.block_until_ready(out)

    # Pure-JAX f32 reference (kernel uses bf16 MXU operands -> looser tolerance).
    ref = _gelu_tanh(x2d @ w_fc + b_fc) @ w_proj + b_proj
    max_err = float(jnp.max(jnp.abs(out2d - ref)))
    assert jnp.allclose(out2d, ref, atol=2e-2, rtol=2e-2), f"max abs err {max_err}"

    print("KERNEL_OK")
</pallas_src>

<mosaic_0001>
module attributes {stable_mosaic.version = 11 : i64} {
  func.func @mlp_kernel(%arg0: i32, %arg1: i32, %arg2: memref<64x128xbf16, #tpu.memory_space<vmem>>, %arg3: memref<128x256xbf16, #tpu.memory_space<vmem>>, %arg4: memref<1x256xf32, #tpu.memory_space<vmem>>, %arg5: memref<256x128xbf16, #tpu.memory_space<vmem>>, %arg6: memref<1x128xf32, #tpu.memory_space<vmem>>, %arg7: memref<64x128xf32, #tpu.memory_space<vmem>>, %arg8: memref<64x128xf32, #tpu.memory_space<vmem>>) attributes {dimension_semantics = [#tpu.dimension_semantics<parallel>, #tpu.dimension_semantics<arbitrary>], iteration_bounds = array<i64: 2, 2>, scalar_prefetch = 0 : i64, scratch_operands = 1 : i64, tpu.core_type = #tpu.core_type<tc>, window_params = [{transform_indices = @transform_0, window_bounds = array<i64: 64, 128>}, {transform_indices = @transform_1, window_bounds = array<i64: 128, 256>}, {transform_indices = @transform_2, window_bounds = array<i64: 1, 256>}, {transform_indices = @transform_3, window_bounds = array<i64: 256, 128>}, {pipeline_mode = #tpu.pipeline_mode<synchronous>, transform_indices = @transform_4, window_bounds = array<i64: 1, 128>}, {transform_indices = @transform_5, window_bounds = array<i64: 64, 128>}]} {
    %c0_i32 = arith.constant 0 : i32
    %0 = arith.cmpi eq, %arg1, %c0_i32 : i32
    %1 = arith.extui %0 : i1 to i32
    %c0_i32_0 = arith.constant 0 : i32
    %2 = arith.cmpi ne, %1, %c0_i32_0 : i32
    scf.if %2 {
      %cst_18 = arith.constant 0.000000e+00 : f32
      %31 = vector.broadcast %cst_18 : f32 to vector<64x128xf32>
      %c0_19 = arith.constant 0 : index
      %c0_20 = arith.constant 0 : index
      %32 = vector.load %arg8[%c0_19, %c0_20] : memref<64x128xf32, #tpu.memory_space<vmem>>, vector<64x128xf32>
      tpu.vector_store %arg8[%c0_19, %c0_20], %31 {strides = array<i32>} : memref<64x128xf32, #tpu.memory_space<vmem>>, vector<64x128xf32>,
    } else {
    }
    %c0 = arith.constant 0 : index
    %c0_1 = arith.constant 0 : index
    %3 = vector.load %arg2[%c0, %c0_1] : memref<64x128xbf16, #tpu.memory_space<vmem>>, vector<64x128xbf16>
    %c0_2 = arith.constant 0 : index
    %c0_3 = arith.constant 0 : index
    %4 = vector.load %arg3[%c0_2, %c0_3] : memref<128x256xbf16, #tpu.memory_space<vmem>>, vector<128x256xbf16>
    %cst = arith.constant dense<0.000000e+00> : vector<64x256xf32>
    %5 = tpu.matmul %3, %4, %cst {dimension_numbers = #tpu.dot_dimension_numbers<[1], [0], [0], [1], [0, 0, 1, 1], [], []>} : vector<64x128xbf16>, vector<128x256xbf16>, vector<64x256xf32> -> vector<64x256xf32>
    %c0_4 = arith.constant 0 : index
    %c0_5 = arith.constant 0 : index
    %6 = vector.load %arg4[%c0_4, %c0_5] : memref<1x256xf32, #tpu.memory_space<vmem>>, vector<1x256xf32>
    %7 = vector.broadcast %6 : vector<1x256xf32> to vector<64x256xf32>
    %8 = arith.addf %5, %7 : vector<64x256xf32>
    %cst_6 = arith.constant 5.000000e-01 : f32
    %9 = vector.broadcast %cst_6 : f32 to vector<64x256xf32>
    %10 = arith.mulf %9, %8 : vector<64x256xf32>
    %cst_7 = arith.constant 4.471500e-02 : f32
    %11 = vector.broadcast %cst_7 : f32 to vector<64x256xf32>
    %12 = arith.mulf %11, %8 : vector<64x256xf32>
    %13 = arith.mulf %12, %8 : vector<64x256xf32>
    %14 = arith.mulf %13, %8 : vector<64x256xf32>
    %15 = arith.addf %8, %14 : vector<64x256xf32>
    %cst_8 = arith.constant 0.797884583 : f32
    %16 = vector.broadcast %cst_8 : f32 to vector<64x256xf32>
    %17 = arith.mulf %16, %15 : vector<64x256xf32>
    %18 = math.tanh %17 : vector<64x256xf32>
    %cst_9 = arith.constant 1.000000e+00 : f32
    %19 = vector.broadcast %cst_9 : f32 to vector<64x256xf32>
    %20 = arith.addf %19, %18 : vector<64x256xf32>
    %21 = arith.mulf %10, %20 : vector<64x256xf32>
    %c0_10 = arith.constant 0 : index
    %c0_11 = arith.constant 0 : index
    %22 = vector.load %arg8[%c0_10, %c0_11] : memref<64x128xf32, #tpu.memory_space<vmem>>, vector<64x128xf32>
    %23 = arith.truncf %21 : vector<64x256xf32> to vector<64x256xbf16>
    %c0_12 = arith.constant 0 : index
    %c0_13 = arith.constant 0 : index
    %24 = vector.load %arg5[%c0_12, %c0_13] : memref<256x128xbf16, #tpu.memory_space<vmem>>, vector<256x128xbf16>
    %cst_14 = arith.constant dense<0.000000e+00> : vector<64x128xf32>
    %25 = tpu.matmul %23, %24, %cst_14 {dimension_numbers = #tpu.dot_dimension_numbers<[1], [0], [0], [1], [0, 0, 1, 1], [], []>} : vector<64x256xbf16>, vector<256x128xbf16>, vector<64x128xf32> -> vector<64x128xf32>
    %26 = arith.addf %22, %25 : vector<64x128xf32>
    %c0_15 = arith.constant 0 : index
    %c0_16 = arith.constant 0 : index
    %27 = vector.load %arg8[%c0_15, %c0_16] : memref<64x128xf32, #tpu.memory_space<vmem>>, vector<64x128xf32>
    tpu.vector_store %arg8[%c0_15, %c0_16], %26 {strides = array<i32>} : memref<64x128xf32, #tpu.memory_space<vmem>>, vector<64x128xf32>,
    %c1_i32 = arith.constant 1 : i32
    %28 = arith.cmpi eq, %arg1, %c1_i32 : i32
    %29 = arith.extui %28 : i1 to i32
    %c0_i32_17 = arith.constant 0 : i32
    %30 = arith.cmpi ne, %29, %c0_i32_17 : i32
    scf.if %30 {
      %c0_18 = arith.constant 0 : index
      %c0_19 = arith.constant 0 : index
      %31 = vector.load %arg8[%c0_18, %c0_19] : memref<64x128xf32, #tpu.memory_space<vmem>>, vector<64x128xf32>
      %c0_20 = arith.constant 0 : index
      %c0_21 = arith.constant 0 : index
      %32 = vector.load %arg6[%c0_20, %c0_21] : memref<1x128xf32, #tpu.memory_space<vmem>>, vector<1x128xf32>
      %33 = vector.broadcast %32 : vector<1x128xf32> to vector<64x128xf32>
      %34 = arith.addf %31, %33 : vector<64x128xf32>
      %c0_22 = arith.constant 0 : index
      %c0_23 = arith.constant 0 : index
      %35 = vector.load %arg7[%c0_22, %c0_23] : memref<64x128xf32, #tpu.memory_space<vmem>>, vector<64x128xf32>
      tpu.vector_store %arg7[%c0_22, %c0_23], %34 {strides = array<i32>} : memref<64x128xf32, #tpu.memory_space<vmem>>, vector<64x128xf32>,
    } else {
    }
    return
  }
  func.func @transform_0(%arg0: i32, %arg1: i32) -> (i32, i32) {
    %c0_i32 = arith.constant 0 : i32
    %c0_i32_0 = arith.constant 0 : i32
    return %arg0, %c0_i32 : i32, i32
  }
  func.func @transform_1(%arg0: i32, %arg1: i32) -> (i32, i32) {
    %c0_i32 = arith.constant 0 : i32
    %c0_i32_0 = arith.constant 0 : i32
    return %c0_i32, %arg1 : i32, i32
  }
  func.func @transform_2(%arg0: i32, %arg1: i32) -> (i32, i32) {
    %c0_i32 = arith.constant 0 : i32
    %c0_i32_0 = arith.constant 0 : i32
    return %c0_i32, %arg1 : i32, i32
  }
  func.func @transform_3(%arg0: i32, %arg1: i32) -> (i32, i32) {
    %c0_i32 = arith.constant 0 : i32
    %c0_i32_0 = arith.constant 0 : i32
    return %arg1, %c0_i32 : i32, i32
  }
  func.func @transform_4(%arg0: i32, %arg1: i32) -> (i32, i32) {
    %c0_i32 = arith.constant 0 : i32
    %c0_i32_0 = arith.constant 0 : i32
    %c0_i32_1 = arith.constant 0 : i32
    return %c0_i32, %c0_i32_0 : i32, i32
  }
  func.func @transform_5(%arg0: i32, %arg1: i32) -> (i32, i32) {
    %c0_i32 = arith.constant 0 : i32
    %c0_i32_0 = arith.constant 0 : i32
    return %arg0, %c0_i32 : i32, i32
  }
}

</mosaic_0001>

<llo_original>
// kernel: tpu_custom_call.1
$region0: #{tpu_custom_call.1}
  #allocation0 [shape = 'u32[]', space=smem, size = 0x4, offset = 0x4, fixed_abs, tag = 'smem constant byte address 0x4 - core index']
  #allocation1 [shape = 'u32[144,128]{1,0:T(1,128)}', space=vmem, size = 0x12000, scoped, tag = 'internal scratch']
  #allocation2 [shape = 'f32[64,128]{1,0:T(8,128)}', space=vmem, size = 0x8000, scoped, tag = 'scratch operand']
  %s0 = inlined_call_operand.hbm [shape: bf16[128,128], index: 0, kind: input, shape index: {}]
  %s1 = inlined_call_operand.hbm [shape: bf16[128,512], index: 1, kind: input, shape index: {}]
  %s2 = inlined_call_operand.vmem [shape: f32[1,512], index: 2, kind: input, shape index: {}]
  %s3 = inlined_call_operand.hbm [shape: bf16[512,128], index: 3, kind: input, shape index: {}]
  %s4 = inlined_call_operand.vmem [shape: f32[1,128], index: 4, kind: input, shape index: {}]
  %s5 = inlined_call_operand.hbm [shape: f32[128,128], index: 5, kind: output, shape index: {}]
  %s6 = sld [smem:[#allocation0]]
  $region73: #{tpu_custom_call.1} parent=0
    _
  %s8 = ssub.s32 1, %s6
  %s9 = scalar_select 0, %s8, %s6
  $region1: #{tpu_custom_call.1} parent=0
    #allocation3 [shape = 'u8[32768]{0}', space=vmem, size = 0x8000, scoped, tag = 'input window, operand 0']
    #allocation4 [shape = 's32[2]{0}', space=sflag, size = 0x8, scoped, tag = 'scoped memory for tpu_custom_call.1']
    #allocation5 [shape = 's32[2]{0}', space=sflag, size = 0x8, scoped, tag = 'scoped memory for tpu_custom_call.1']
    #allocation6 [shape = 'u8[131072]{0}', space=vmem, size = 0x20000, scoped, tag = 'input window, operand 1']
    #allocation7 [shape = 's32[2]{0}', space=sflag, size = 0x8, scoped, tag = 'scoped memory for tpu_custom_call.1']
    #allocation8 [shape = 'u8[131072]{0}', space=vmem, size = 0x20000, scoped, tag = 'input window, operand 3']
    #allocation9 [shape = 'u8[65536]{0}', space=vmem, size = 0x10000, scoped, tag = 'output window, operand 0']
    %10 = vsyncpa [#allocation4], 0
    %s11 = scalar_lea.sflag [#allocation4], 1
    %12 = vsyncpa %s11, 0
    %13 = vsyncpa [#allocation7], 0
    %s14 = scalar_lea.sflag [#allocation7], 1
    %15 = vsyncpa %s14, 0
    %16 = vsyncpa [#allocation5], 0
    %s17 = scalar_lea.sflag [#allocation5], 1
    %18 = vsyncpa %s17, 0
    loop: start=0, step=1, limit=6
    $region2: #{tpu_custom_call.1} parent=1 // loop_pre_header
      _
    $region3: #{tpu_custom_call.1} parent=1 // loop_header
      %s20 = sphi 0, %s24
      %p21 = scmp.ge.s32.totalorder %s20, 6
      %s27 = sphi 0, %s39
      %s28 = sphi 0, %s35
      %s29 = sphi 0, %s27
      %s30 = sphi 0, %s28
      %s31 = sphi 0, %s29
      %s32 = sphi 0, %s30
      %s42 = sphi 0, %s44
      %s45 = sphi 0, %s42
      %s46 = sphi 0, %s45
      %s62 = sphi 0, %s46
      %s68 = sphi 0, %s70
      %s71 = sphi 0, %s68
      %s72 = sphi 0, %s71
      %s88 = sphi 0, %s72
      %s94 = sphi 0, %s96
      %s97 = sphi 0, %s94
      %s98 = sphi 0, %s97
      %s114 = sphi 0, %s98
      %s120 = sphi 0, %s122
      %s123 = sphi 0, %s120
      %s124 = sphi 0, %s123
      %s140 = sphi 0, %s124
      %s144 = sphi 0, %s144
      %s146 = sphi 0, %s144
      %s147 = sphi 0, %s146
      %s161 = sphi 0, %s147
      %s167 = sphi 0, %s169
      %s170 = sphi 0, %s167
      %s171 = sphi 0, %s170
      %s187 = sphi 0, %s171
    $region4: #{tpu_custom_call.1} parent=1 // loop_header_branch
      %23 = sbr.rel (%p21) target = $region8
    $region5: #{tpu_custom_call.1} parent=1 // loop_body
      %s25 = ssub.s32 %s20, 1
      %s26 = ssub.s32 %s20, 2
      %s33 = sadd.s32 1, %s28
      %p34 = scmp.ge.s32.totalorder %s33, 2
      %s35 = scalar_select %p34, 0, %s33
      %s36 = sadd.s32 1, %s27
      %s37 = scalar_select %p34, %s36, %s27
      %p38 = scmp.ge.s32.totalorder %s37, 2
      %s39 = scalar_select %p38, 0, %s37
      %s40 = ssub.s32 %s27, %s39
      %p41 = scmp.eq.s32.totalorder %s40, 0
      %s43 = sadd.s32 %s42, 1
      %s44 = scalar_select %p41, %s42, %s43
      %p47 = pneg %p41
      %p48 = scmp.eq.s32.totalorder %s20, 3
      %p49 = por %p47, %p48
      %p50 = scmp.ne.s32.totalorder %s42, %s45
      %p51 = scmp.eq.s32.totalorder %s20, 0
      %p52 = por %p50, %p51
      %p53 = scmp.ne.s32.totalorder %s42, %s45
      %p54 = scmp.eq.s32.totalorder %s25, 3
      %p55 = por %p53, %p54
      %p56 = scmp.ne.s32.totalorder %s45, %s46
      %p57 = scmp.eq.s32.totalorder %s25, 0
      %p58 = por %p56, %p57
      %p59 = scmp.ne.s32.totalorder %s45, %s46
      %p60 = scmp.eq.s32.totalorder %s26, 3
      %p61 = por %p59, %p60
      %p63 = scmp.ne.s32.totalorder %s46, %s62
      %p64 = scmp.eq.s32.totalorder %s26, 0
      %p65 = por %p63, %p64
      %s66 = ssub.s32 %s28, %s35
      %p67 = scmp.eq.s32.totalorder %s66, 0
      %s69 = sadd.s32 %s68, 1
      %s70 = scalar_select %p67, %s68, %s69
      %p73 = pneg %p67
      %p74 = scmp.eq.s32.totalorder %s20, 3
      %p75 = por %p73, %p74
      %p76 = scmp.ne.s32.totalorder %s68, %s71
      %p77 = scmp.eq.s32.totalorder %s20, 0
      %p78 = por %p76, %p77
      %p79 = scmp.ne.s32.totalorder %s68, %s71
      %p80 = scmp.eq.s32.totalorder %s25, 3
      %p81 = por %p79, %p80
      %p82 = scmp.ne.s32.totalorder %s71, %s72
      %p83 = scmp.eq.s32.totalorder %s25, 0
      %p84 = por %p82, %p83
      %p85 = scmp.ne.s32.totalorder %s71, %s72
      %p86 = scmp.eq.s32.totalorder %s26, 3
      %p87 = por %p85, %p86
      %p89 = scmp.ne.s32.totalorder %s72, %s88
      %p90 = scmp.eq.s32.totalorder %s26, 0
      %p91 = por %p89, %p90
      %s92 = ssub.s32 %s28, %s35
      %p93 = scmp.eq.s32.totalorder %s92, 0
      %s95 = sadd.s32 %s94, 1
      %s96 = scalar_select %p93, %s94, %s95
      %p99 = pneg %p93
      %p100 = scmp.eq.s32.totalorder %s20, 3
      %p101 = por %p99, %p100
      %p102 = scmp.ne.s32.totalorder %s94, %s97
      %p103 = scmp.eq.s32.totalorder %s20, 0
      %p104 = por %p102, %p103
      %p105 = scmp.ne.s32.totalorder %s94, %s97
      %p106 = scmp.eq.s32.totalorder %s25, 3
      %p107 = por %p105, %p106
      %p108 = scmp.ne.s32.totalorder %s97, %s98
      %p109 = scmp.eq.s32.totalorder %s25, 0
      %p110 = por %p108, %p109
      %p111 = scmp.ne.s32.totalorder %s97, %s98
      %p112 = scmp.eq.s32.totalorder %s26, 3
      %p113 = por %p111, %p112
      %p115 = scmp.ne.s32.totalorder %s98, %s114
      %p116 = scmp.eq.s32.totalorder %s26, 0
      %p117 = por %p115, %p116
      %s118 = ssub.s32 %s28, %s35
      %p119 = scmp.eq.s32.totalorder %s118, 0
      %s121 = sadd.s32 %s120, 1
      %s122 = scalar_select %p119, %s120, %s121
      %p125 = pneg %p119
      %p126 = scmp.eq.s32.totalorder %s20, 3
      %p127 = por %p125, %p126
      %p128 = scmp.ne.s32.totalorder %s120, %s123
      %p129 = scmp.eq.s32.totalorder %s20, 0
      %p130 = por %p128, %p129
      %p131 = scmp.ne.s32.totalorder %s120, %s123
      %p132 = scmp.eq.s32.totalorder %s25, 3
      %p133 = por %p131, %p132
      %p134 = scmp.ne.s32.totalorder %s123, %s124
      %p135 = scmp.eq.s32.totalorder %s25, 0
      %p136 = por %p134, %p135
      %p137 = scmp.ne.s32.totalorder %s123, %s124
      %p138 = scmp.eq.s32.totalorder %s26, 3
      %p139 = por %p137, %p138
      %p141 = scmp.ne.s32.totalorder %s124, %s140
      %p142 = scmp.eq.s32.totalorder %s26, 0
      %p143 = por %p141, %p142
      %s145 = sadd.s32 %s144, 1
      %p148 = scmp.eq.s32.totalorder %s20, 3
      %p149 = scmp.ne.s32.totalorder %s144, %s146
      %p150 = scmp.eq.s32.totalorder %s20, 0
      %p151 = por %p149, %p150
      %p152 = scmp.ne.s32.totalorder %s144, %s146
      %p153 = scmp.eq.s32.totalorder %s25, 3
      %p154 = por %p152, %p153
      %p155 = scmp.ne.s32.totalorder %s146, %s147
      %p156 = scmp.eq.s32.totalorder %s25, 0
      %p157 = por %p155, %p156
      %p158 = scmp.ne.s32.totalorder %s146, %s147
      %p159 = scmp.eq.s32.totalorder %s26, 3
      %p160 = por %p158, %p159
      %p162 = scmp.ne.s32.totalorder %s147, %s161
      %p163 = scmp.eq.s32.totalorder %s26, 0
      %p164 = por %p162, %p163
      %s165 = ssub.s32 %s27, %s39
      %p166 = scmp.eq.s32.totalorder %s165, 0
      %s168 = sadd.s32 %s167, 1
      %s169 = scalar_select %p166, %s167, %s168
      %p172 = pneg %p166
      %p173 = scmp.eq.s32.totalorder %s20, 3
      %p174 = por %p172, %p173
      %p175 = scmp.ne.s32.totalorder %s167, %s170
      %p176 = scmp.eq.s32.totalorder %s20, 0
      %p177 = por %p175, %p176
      %p178 = scmp.ne.s32.totalorder %s167, %s170
      %p179 = scmp.eq.s32.totalorder %s25, 3
      %p180 = por %p178, %p179
      %p181 = scmp.ne.s32.totalorder %s170, %s171
      %p182 = scmp.eq.s32.totalorder %s25, 0
      %p183 = por %p181, %p182
      %p184 = scmp.ne.s32.totalorder %s170, %s171
      %p185 = scmp.eq.s32.totalorder %s26, 3
      %p186 = por %p184, %p185
      %p188 = scmp.ne.s32.totalorder %s171, %s187
      %p189 = scmp.eq.s32.totalorder %s26, 0
      %p190 = por %p188, %p189
      %p191 = scmp.le.s32.totalorder 1, %s20
      %p192 = scmp.lt.s32.totalorder %s20, 5
      %p193 = pnand %p191, %p192
      %p194 = pneg %p193
      // Predicated region
      $region9: #{tpu_custom_call.1} parent=5 // pred_check
        _
      $region10: #{tpu_custom_call.1} parent=5 // pred_check_branch
        %196 = sbr.rel (%p193) target = $region12
      $region11: #{tpu_custom_call.1} parent=5 // pred_region
        %s197 = ssub.s32 %s20, 1
        // Predicated region
        $region13: #{tpu_custom_call.1} parent=11 // pred_check
          %p198 = pneg %p157
        $region14: #{tpu_custom_call.1} parent=11 // pred_check_branch
          %200 = sbr.rel (%p198) target = $region16
        $region15: #{tpu_custom_call.1} parent=11 // pred_region
          _
        $region16: #{tpu_custom_call.1} parent=11 // pred_fallthru
          _
      $region12: #{tpu_custom_call.1} parent=5 // pred_fallthru
        _
      %p201 = scmp.lt.s32.totalorder %s20, 4
      // Predicated region
      $region17: #{tpu_custom_call.1} parent=5 // pred_check
        %p202 = pneg %p201
      $region18: #{tpu_custom_call.1} parent=5 // pred_check_branch
        %204 = sbr.rel (%p202) target = $region20
      $region19: #{tpu_custom_call.1} parent=5 // pred_region
        // Predicated region
        $region21: #{tpu_custom_call.1} parent=19 // pred_check
          %p205 = pneg %p52
        $region22: #{tpu_custom_call.1} parent=19 // pred_check_branch
          %207 = sbr.rel (%p205) target = $region24
        $region23: #{tpu_custom_call.1} parent=19 // pred_region
          %s208 = sand.u32 %s42, 1
          %s209 = scalar_lea.sflag [#allocation4], %s208
          %s210 = sand.u32 %s42, 1
          %s211 = smul.addr %s210, 32
          %s212 = scalar_lea.vmem [#allocation3], %s211
          %s213 = smul.u32 8, %s27
          %s215 = ssub.s32 512, 512
          %216 = vsyncadd %s209, %s215
          %s217 = smul.addr %s213, 64
          %s218 = scalar_lea.hbm %s0, %s217
          %s219 = sshll.u32 %s212, 4
          %s220 = int_to_ptr.vmem [resolvable:$true] %s219
          %225 = dma.hbm_to_vmem [thread:$0]  %s218, 512, %s220, %s209, 64, 64, 4
        $region24: #{tpu_custom_call.1} parent=19 // pred_fallthru
          _
        // Predicated region
        $region25: #{tpu_custom_call.1} parent=19 // pred_check
          %p226 = pneg %p78
        $region26: #{tpu_custom_call.1} parent=19 // pred_check_branch
          %228 = sbr.rel (%p226) target = $region28
        $region27: #{tpu_custom_call.1} parent=19 // pred_region
          %s229 = sand.u32 %s20, 1
          %s230 = scalar_lea.sflag [#allocation7], %s229
          %s231 = sand.u32 %s68, 1
          %s232 = smul.addr %s231, 128
          %s233 = scalar_lea.vmem [#allocation6], %s232
          %s234 = smul.u32 2, %s28
          %s236 = ssub.s32 2048, 2048
          %237 = vsyncadd %s230, %s236
          %s238 = smul.addr %s234, 64
          %s239 = scalar_lea.hbm %s1, %s238
          %s240 = sshll.u32 %s233, 4
          %s241 = int_to_ptr.vmem [resolvable:$true] %s240
          %246 = dma.hbm_to_vmem [thread:$0]  %s239, 2048, %s241, %s230, 256, 128, 8
        $region28: #{tpu_custom_call.1} parent=19 // pred_fallthru
          _
        // Predicated region
        $region29: #{tpu_custom_call.1} parent=19 // pred_check
          %p247 = pneg %p104
        $region30: #{tpu_custom_call.1} parent=19 // pred_check_branch
          %249 = sbr.rel (%p247) target = $region32
        $region31: #{tpu_custom_call.1} parent=19 // pred_region
          %s250 = smul.u32 2, %s28
          %p251 = scmp.lt.s32.totalorder %s250, 3
          %s252 = scalar_select %p251, %s250, 3
          %s253 = scalar_lea.vmem %s2, %s252
          %s254 = smul.u32 2, %s28
        $region32: #{tpu_custom_call.1} parent=19 // pred_fallthru
          _
        // Predicated region
        $region33: #{tpu_custom_call.1} parent=19 // pred_check
          %p255 = pneg %p130
        $region34: #{tpu_custom_call.1} parent=19 // pred_check_branch
          %257 = sbr.rel (%p255) target = $region36
        $region35: #{tpu_custom_call.1} parent=19 // pred_region
          %s258 = sand.u32 %s20, 1
          %s259 = scalar_lea.sflag [#allocation7], %s258
          %s260 = sand.u32 %s120, 1
          %s261 = smul.addr %s260, 128
          %s262 = scalar_lea.vmem [#allocation8], %s261
          %s263 = smul.u32 32, %s28
          %s265 = ssub.s32 2048, 2048
          %266 = vsyncadd %s259, %s265
          %s267 = smul.addr %s263, 64
          %s268 = scalar_lea.hbm %s3, %s267
          %s269 = sshll.u32 %s262, 4
          %s270 = int_to_ptr.vmem [resolvable:$true] %s269
          %275 = dma.hbm_to_vmem [thread:$0]  %s268, 2048, %s270, %s259, 64, 64, 4
        $region36: #{tpu_custom_call.1} parent=19 // pred_fallthru
          _
      $region20: #{tpu_custom_call.1} parent=5 // pred_fallthru
        _
      %p276 = scmp.le.s32.totalorder 1, %s20
      %p277 = scmp.lt.s32.totalorder %s20, 5
      %p278 = pnand %p276, %p277
      %p279 = pneg %p278
      // Predicated region
      $region37: #{tpu_custom_call.1} parent=5 // pred_check
        _
      $region38: #{tpu_custom_call.1} parent=5 // pred_check_branch
        %281 = sbr.rel (%p278) target = $region40
      $region39: #{tpu_custom_call.1} parent=5 // pred_region
        %s282 = ssub.s32 %s20, 1
        %s283 = sand.u32 %s45, 1
        %s284 = scalar_lea.sflag [#allocation4], %s283
        %s285 = sand.u32 %s45, 1
        %s286 = smul.addr %s285, 32
        %s287 = scalar_lea.vmem [#allocation3], %s286
        // Predicated region
        $region41: #{tpu_custom_call.1} parent=39 // pred_check
          %p288 = pneg %p58
        $region42: #{tpu_custom_call.1} parent=39 // pred_check_branch
          %290 = sbr.rel (%p288) target = $region44
        $region43: #{tpu_custom_call.1} parent=39 // pred_region
          %291 = dma.done %s284, 512
        $region44: #{tpu_custom_call.1} parent=39 // pred_fallthru
          _
        %s292 = sand.u32 %s25, 1
        %s293 = scalar_lea.sflag [#allocation7], %s292
        %s294 = sand.u32 %s71, 1
        %s295 = smul.addr %s294, 128
        %s296 = scalar_lea.vmem [#allocation6], %s295
        // Predicated region
        $region45: #{tpu_custom_call.1} parent=39 // pred_check
          %p297 = pneg %p84
        $region46: #{tpu_custom_call.1} parent=39 // pred_check_branch
          %299 = sbr.rel (%p297) target = $region48
        $region47: #{tpu_custom_call.1} parent=39 // pred_region
          %300 = dma.done %s293, 2048
        $region48: #{tpu_custom_call.1} parent=39 // pred_fallthru
          _
        %s301 = sand.u32 %s25, 1
        %s302 = scalar_lea.sflag [#allocation7], %s301
        %s303 = sand.u32 %s123, 1
        %s304 = smul.addr %s303, 128
        %s305 = scalar_lea.vmem [#allocation8], %s304
        // Predicated region
        $region49: #{tpu_custom_call.1} parent=39 // pred_check
          %p306 = pneg %p136
        $region50: #{tpu_custom_call.1} parent=39 // pred_check_branch
          %308 = sbr.rel (%p306) target = $region52
        $region51: #{tpu_custom_call.1} parent=39 // pred_region
          %309 = dma.done %s302, 2048
        $region52: #{tpu_custom_call.1} parent=39 // pred_fallthru
          _
        %s310 = sand.u32 %s45, 1
        %s311 = scalar_lea.sflag [#allocation4], %s310
        %s312 = sand.u32 %s45, 1
        %s313 = smul.addr %s312, 32
        %s314 = scalar_lea.vmem [#allocation3], %s313
        %p315 = pneg %p58
        %p316 = pneg %p55
        %s317 = sand.u32 %s25, 1
        %s318 = scalar_lea.sflag [#allocation7], %s317
        %s319 = sand.u32 %s71, 1
        %s320 = smul.addr %s319, 128
        %s321 = scalar_lea.vmem [#allocation6], %s320
        %p322 = pneg %p84
        %p323 = pneg %p81
        %s324 = smul.u32 2, %s30
        %p325 = scmp.lt.s32.totalorder %s324, 3
        %s326 = scalar_select %p325, %s324, 3
        %s327 = scalar_lea.vmem %s2, %s326
        %p328 = pneg %p110
        %p329 = pneg %p107
        %s330 = sand.u32 %s25, 1
        %s331 = scalar_lea.sflag [#allocation7], %s330
        %s332 = sand.u32 %s123, 1
        %s333 = smul.addr %s332, 128
        %s334 = scalar_lea.vmem [#allocation8], %s333
        %p335 = pneg %p136
        %p336 = pneg %p133
        %p337 = pneg %p157
        %p338 = pneg %p154
        %p339 = pneg %p183
        %p340 = pneg %p180
        %s341 = sand.u32 %s170, 1
        %s342 = scalar_lea.sflag [#allocation5], %s341
        %s343 = sand.u32 %s170, 1
        %s344 = smul.addr %s343, 64
        %s345 = scalar_lea.vmem [#allocation9], %s344
        %s346 = smul.u32 8, %s29
        %s347 = smul.u32 2, %s30
        %s348 = smul.u32 2, %s30
        %p349 = scmp.lt.s32.totalorder %s348, 3
        %s350 = scalar_select %p349, %s348, 3
        %s351 = scalar_lea.vmem %s2, %s350
        %s352 = smul.u32 2, %s30
        %s353 = smul.u32 32, %s30
        %s354 = smul.u32 8, %s29
        %p356 = scmp.eq.s32.totalorder %s30, 0
        // Predicated region
        $region53: #{tpu_custom_call.1} parent=39 // pred_check
          %p357 = pneg %p356
        $region54: #{tpu_custom_call.1} parent=39 // pred_check_branch
          %359 = sbr.rel (%p357) target = $region56
        $region55: #{tpu_custom_call.1} parent=39 // pred_region
          %360 = vst [vmem:[#allocation2] sm:$0xff] 0.0
          %361 = vst [vmem:[#allocation2 + $0x8] sm:$0xff] 0.0
          %362 = vst [vmem:[#allocation2 + $0x10] sm:$0xff] 0.0
          %363 = vst [vmem:[#allocation2 + $0x18] sm:$0xff] 0.0
          %364 = vst [vmem:[#allocation2 + $0x20] sm:$0xff] 0.0
          %365 = vst [vmem:[#allocation2 + $0x28] sm:$0xff] 0.0
          %366 = vst [vmem:[#allocation2 + $0x30] sm:$0xff] 0.0
          %367 = vst [vmem:[#allocation2 + $0x38] sm:$0xff] 0.0
        $region56: #{tpu_custom_call.1} parent=39 // pred_fallthru
          _
        %v368 = vld [vmem:[%s287] sm:$0xf]
        %v369 = vld [vmem:[%s287 + $0x4] sm:$0xf]
        %v370 = vld [vmem:[%s287 + $0x8] sm:$0xf]
        %v371 = vld [vmem:[%s287 + $0xc] sm:$0xf]
        %v372 = vld [vmem:[%s287 + $0x10] sm:$0xf]
        %v373 = vld [vmem:[%s287 + $0x14] sm:$0xf]
        %v374 = vld [vmem:[%s287 + $0x18] sm:$0xf]
        %v375 = vld [vmem:[%s287 + $0x1c] sm:$0xf]
        %v376 = vld [vmem:[%s296] sm:$0xff]
        %v377 = vld [vmem:[%s296 + $0x8] sm:$0xff]
        %v378 = vld [vmem:[%s296 + $0x10] sm:$0xff]
        %v379 = vld [vmem:[%s296 + $0x18] sm:$0xff]
        %v380 = vld [vmem:[%s296 + $0x20] sm:$0xff]
        %v381 = vld [vmem:[%s296 + $0x28] sm:$0xff]
        %v382 = vld [vmem:[%s296 + $0x30] sm:$0xff]
        %v383 = vld [vmem:[%s296 + $0x38] sm:$0xff]
        %v384 = vld [vmem:[%s296 + $0x40] sm:$0xff]
        %v385 = vld [vmem:[%s296 + $0x48] sm:$0xff]
        %v386 = vld [vmem:[%s296 + $0x50] sm:$0xff]
        %v387 = vld [vmem:[%s296 + $0x58] sm:$0xff]
        %v388 = vld [vmem:[%s296 + $0x60] sm:$0xff]
        %v389 = vld [vmem:[%s296 + $0x68] sm:$0xff]
        %v390 = vld [vmem:[%s296 + $0x70] sm:$0xff]
        %v391 = vld [vmem:[%s296 + $0x78] sm:$0xff]
        %v392 = vld [vmem:[%s351] sm:$0x3]
        %v394 = vlaneseq
        %v395 = vshrl.u32 %v394, 7
        %v396 = vsub.s32 0, %v395
        %v397 = vrot.slane %v392, %v396
        %v398 = vlaneseq
        %v399 = vshrl.u32 %v398, 7
        %v400 = vsub.s32 1, %v399
        %v401 = vrot.slane %v392, %v400
        %v412 = vunpack.c.l.b16 %v368
        %v413 = vunpack.c.l.b16 %v369
        %v414 = vunpack.c.l.b16 %v370
        %v415 = vunpack.c.l.b16 %v371
        %v416 = vunpack.c.l.b16 %v372
        %v417 = vunpack.c.l.b16 %v373
        %v418 = vunpack.c.l.b16 %v374
        %v419 = vunpack.c.l.b16 %v375
        %v420 = vpack.c.b16 %v413, %v412
        %v421 = vpack.c.b16 %v415, %v414
        %v422 = vpack.c.b16 %v417, %v416
        %v423 = vpack.c.b16 %v419, %v418
        %v444 = vunpack.c.l.b16 %v376
        %v445 = vunpack.c.h.b16 %v376
        %v446 = vunpack.c.l.b16 %v377
        %v447 = vunpack.c.h.b16 %v377
        %v448 = vunpack.c.l.b16 %v378
        %v449 = vunpack.c.h.b16 %v378
        %v450 = vunpack.c.l.b16 %v379
        %v451 = vunpack.c.h.b16 %v379
        %v452 = vunpack.c.l.b16 %v380
        %v453 = vunpack.c.h.b16 %v380
        %v454 = vunpack.c.l.b16 %v381
        %v455 = vunpack.c.h.b16 %v381
        %v456 = vunpack.c.l.b16 %v382
        %v457 = vunpack.c.h.b16 %v382
        %v458 = vunpack.c.l.b16 %v383
        %v459 = vunpack.c.h.b16 %v383
        %v460 = vunpack.c.l.b16 %v384
        %v461 = vunpack.c.h.b16 %v384
        %v462 = vunpack.c.l.b16 %v385
        %v463 = vunpack.c.h.b16 %v385
        %v464 = vunpack.c.l.b16 %v386
        %v465 = vunpack.c.h.b16 %v386
        %v466 = vunpack.c.l.b16 %v387
        %v467 = vunpack.c.h.b16 %v387
        %v468 = vunpack.c.l.b16 %v388
        %v469 = vunpack.c.h.b16 %v388
        %v470 = vunpack.c.l.b16 %v389
        %v471 = vunpack.c.h.b16 %v389
        %v472 = vunpack.c.l.b16 %v390
        %v473 = vunpack.c.h.b16 %v390
        %v474 = vunpack.c.l.b16 %v391
        %v475 = vunpack.c.h.b16 %v391
        %v476 = vpack.c.b16 %v446, %v444
        %v477 = vpack.c.b16 %v447, %v445
        %v478 = vpack.c.b16 %v450, %v448
        %v479 = vpack.c.b16 %v451, %v449
        %v480 = vpack.c.b16 %v454, %v452
        %v481 = vpack.c.b16 %v455, %v453
        %v482 = vpack.c.b16 %v458, %v456
        %v483 = vpack.c.b16 %v459, %v457
        %v484 = vpack.c.b16 %v462, %v460
        %v485 = vpack.c.b16 %v463, %v461
        %v486 = vpack.c.b16 %v466, %v464
        %v487 = vpack.c.b16 %v467, %v465
        %v488 = vpack.c.b16 %v470, %v468
        %v489 = vpack.c.b16 %v471, %v469
        %v490 = vpack.c.b16 %v474, %v472
        %v491 = vpack.c.b16 %v475, %v473
        %508 = vmatprep.subr.bf16.mxu0 %v477
        %509 = vmatpush1.bf16.msra.mxu0 %v476
        %510 = vmatprep.subr.bf16.mxu0 %v479
        %511 = vmatpush1.bf16.msra.mxu0 %v478
        %512 = vmatprep.subr.bf16.mxu0 %v481
        %513 = vmatpush1.bf16.msra.mxu0 %v480
        %514 = vmatprep.subr.bf16.mxu0 %v483
        %515 = vmatpush1.bf16.msra.mxu0 %v482
        %516 = vmatprep.subr.bf16.mxu0 %v485
        %517 = vmatpush1.bf16.msra.mxu0 %v484
        %518 = vmatprep.subr.bf16.mxu0 %v487
        %519 = vmatpush1.bf16.msra.mxu0 %v486
        %520 = vmatprep.subr.bf16.mxu0 %v489
        %521 = vmatpush1.bf16.msra.mxu0 %v488
        %522 = vmatprep.subr.bf16.mxu0 %v491
        %523 = vmatpush1.bf16.msra.mxu0 %v490
        %524 = vmatprep.subr.bf16.mxu0 0
        %525 = vmatpush1.bf16.msra.mxu0 0
        %526 = vmatprep.subr.bf16.mxu0 0
        %527 = vmatpush1.bf16.msra.mxu0 0
        %528 = vmatprep.subr.bf16.mxu0 0
        %529 = vmatpush1.bf16.msra.mxu0 0
        %530 = vmatprep.subr.bf16.mxu0 0
        %531 = vmatpush1.bf16.msra.mxu0 0
        %532 = vmatprep.subr.bf16.mxu0 0
        %533 = vmatpush1.bf16.msra.mxu0 0
        %534 = vmatprep.subr.bf16.mxu0 0
        %535 = vmatpush1.bf16.msra.mxu0 0
        %536 = vmatprep.subr.bf16.mxu0 0
        %537 = vmatpush1.bf16.msra.mxu0 0
        %538 = vmatprep.subr.bf16.mxu0 0
        %539 = vmatpush1.bf16.msra.mxu0 0
        %540 = vmatprep.mubr.bf16.mxu0 0
        %541 = vmatmul.mubr.bf16.gmra.mrb[0].mxu0 %v420
        %v542 = vpop.f32.mrb[0].mxu0
        %v543 = vadd.f32 %v397, %v542
        %v544 = vpop.f32.mrb[0].mxu0
        %v545 = vadd.f32 %v401, %v544
        %v546 = vpop.f32.mrb[0].mxu0
        %v547 = vadd.f32 %v397, %v546
        %v548 = vpop.f32.mrb[0].mxu0
        %v549 = vadd.f32 %v401, %v548
        %550 = vmatprep.mubr.bf16.mxu0 0
        %551 = vmatmul.mubr.bf16.gmra.mrb[0].mxu0 %v421
        %v552 = vpop.f32.mrb[0].mxu0
        %v553 = vadd.f32 %v397, %v552
        %v554 = vpop.f32.mrb[0].mxu0
        %v555 = vadd.f32 %v401, %v554
        %v556 = vpop.f32.mrb[0].mxu0
        %v557 = vadd.f32 %v397, %v556
        %v558 = vpop.f32.mrb[0].mxu0
        %v559 = vadd.f32 %v401, %v558
        %560 = vmatprep.mubr.bf16.mxu0 0
        %561 = vmatmul.mubr.bf16.gmra.mrb[0].mxu0 %v422
        %v562 = vpop.f32.mrb[0].mxu0
        %v563 = vadd.f32 %v397, %v562
        %v564 = vpop.f32.mrb[0].mxu0
        %v565 = vadd.f32 %v401, %v564
        %v566 = vpop.f32.mrb[0].mxu0
        %v567 = vadd.f32 %v397, %v566
        %v568 = vpop.f32.mrb[0].mxu0
        %v569 = vadd.f32 %v401, %v568
        %570 = vmatprep.mubr.bf16.mxu0 0
        %571 = vmatmul.mubr.bf16.gmra.mrb[0].mxu0 %v423
        %v572 = vpop.f32.mrb[0].mxu0
        %v573 = vadd.f32 %v397, %v572
        %v574 = vpop.f32.mrb[0].mxu0
        %v575 = vadd.f32 %v401, %v574
        %v576 = vpop.f32.mrb[0].mxu0
        %v577 = vadd.f32 %v397, %v576
        %v578 = vpop.f32.mrb[0].mxu0
        %v579 = vadd.f32 %v401, %v578
        %580 = vdwg.mxu0
        %v581 = vmul.f32 %v543, 0.5
        %v582 = vmul.f32 %v545, 0.5
        %v583 = vmul.f32 %v547, 0.5
        %v584 = vmul.f32 %v549, 0.5
        %v585 = vmul.f32 %v553, 0.5
        %v586 = vmul.f32 %v555, 0.5
        %v587 = vmul.f32 %v557, 0.5
        %v588 = vmul.f32 %v559, 0.5
        %v589 = vmul.f32 %v563, 0.5
        %v590 = vmul.f32 %v565, 0.5
        %v591 = vmul.f32 %v567, 0.5
        %v592 = vmul.f32 %v569, 0.5
        %v593 = vmul.f32 %v573, 0.5
        %v594 = vmul.f32 %v575, 0.5
        %v595 = vmul.f32 %v577, 0.5
        %v596 = vmul.f32 %v579, 0.5
        %v597 = vmul.f32 %v543, 0.044715
        %v598 = vmul.f32 %v545, 0.044715
        %v599 = vmul.f32 %v547, 0.044715
        %v600 = vmul.f32 %v549, 0.044715
        %v601 = vmul.f32 %v553, 0.044715
        %v602 = vmul.f32 %v555, 0.044715
        %v603 = vmul.f32 %v557, 0.044715
        %v604 = vmul.f32 %v559, 0.044715
        %v605 = vmul.f32 %v563, 0.044715
        %v606 = vmul.f32 %v565, 0.044715
        %v607 = vmul.f32 %v567, 0.044715
        %v608 = vmul.f32 %v569, 0.044715
        %v609 = vmul.f32 %v573, 0.044715
        %v610 = vmul.f32 %v575, 0.044715
        %v611 = vmul.f32 %v577, 0.044715
        %v612 = vmul.f32 %v579, 0.044715
        %v613 = vmul.f32 %v597, %v543
        %v614 = vmul.f32 %v598, %v545
        %v615 = vmul.f32 %v599, %v547
        %v616 = vmul.f32 %v600, %v549
        %v617 = vmul.f32 %v601, %v553
        %v618 = vmul.f32 %v602, %v555
        %v619 = vmul.f32 %v603, %v557
        %v620 = vmul.f32 %v604, %v559
        %v621 = vmul.f32 %v605, %v563
        %v622 = vmul.f32 %v606, %v565
        %v623 = vmul.f32 %v607, %v567
        %v624 = vmul.f32 %v608, %v569
        %v625 = vmul.f32 %v609, %v573
        %v626 = vmul.f32 %v610, %v575
        %v627 = vmul.f32 %v611, %v577
        %v628 = vmul.f32 %v612, %v579
        %v629 = vmul.f32 %v613, %v543
        %v630 = vmul.f32 %v614, %v545
        %v631 = vmul.f32 %v615, %v547
        %v632 = vmul.f32 %v616, %v549
        %v633 = vmul.f32 %v617, %v553
        %v634 = vmul.f32 %v618, %v555
        %v635 = vmul.f32 %v619, %v557
        %v636 = vmul.f32 %v620, %v559
        %v637 = vmul.f32 %v621, %v563
        %v638 = vmul.f32 %v622, %v565
        %v639 = vmul.f32 %v623, %v567
        %v640 = vmul.f32 %v624, %v569
        %v641 = vmul.f32 %v625, %v573
        %v642 = vmul.f32 %v626, %v575
        %v643 = vmul.f32 %v627, %v577
        %v644 = vmul.f32 %v628, %v579
        %v645 = vadd.f32 %v543, %v629
        %v646 = vadd.f32 %v545, %v630
        %v647 = vadd.f32 %v547, %v631
        %v648 = vadd.f32 %v549, %v632
        %v649 = vadd.f32 %v553, %v633
        %v650 = vadd.f32 %v555, %v634
        %v651 = vadd.f32 %v557, %v635
        %v652 = vadd.f32 %v559, %v636
        %v653 = vadd.f32 %v563, %v637
        %v654 = vadd.f32 %v565, %v638
        %v655 = vadd.f32 %v567, %v639
        %v656 = vadd.f32 %v569, %v640
        %v657 = vadd.f32 %v573, %v641
        %v658 = vadd.f32 %v575, %v642
        %v659 = vadd.f32 %v577, %v643
        %v660 = vadd.f32 %v579, %v644
        %v661 = vmul.f32 %v645, 0.7978846
        %v662 = vmul.f32 %v646, 0.7978846
        %v663 = vmul.f32 %v647, 0.7978846
        %v664 = vmul.f32 %v648, 0.7978846
        %v665 = vmul.f32 %v649, 0.7978846
        %v666 = vmul.f32 %v650, 0.7978846
        %v667 = vmul.f32 %v651, 0.7978846
        %v668 = vmul.f32 %v652, 0.7978846
        %v669 = vmul.f32 %v653, 0.7978846
        %v670 = vmul.f32 %v654, 0.7978846
        %v671 = vmul.f32 %v655, 0.7978846
        %v672 = vmul.f32 %v656, 0.7978846
        %v673 = vmul.f32 %v657, 0.7978846
        %v674 = vmul.f32 %v658, 0.7978846
        %v675 = vmul.f32 %v659, 0.7978846
        %v676 = vmul.f32 %v660, 0.7978846
        %v677 = vtanh.pop %v661
        %v678 = vtanh.pop %v662
        %v679 = vtanh.pop %v663
        %v680 = vtanh.pop %v664
        %v681 = vtanh.pop %v665
        %v682 = vtanh.pop %v666
        %v683 = vtanh.pop %v667
        %v684 = vtanh.pop %v668
        %v685 = vtanh.pop %v669
        %v686 = vtanh.pop %v670
        %v687 = vtanh.pop %v671
        %v688 = vtanh.pop %v672
        %v689 = vtanh.pop %v673
        %v690 = vtanh.pop %v674
        %v691 = vtanh.pop %v675
        %v692 = vtanh.pop %v676
        %v693 = vadd.f32 %v677, 1.0
        %v694 = vadd.f32 %v678, 1.0
        %v695 = vadd.f32 %v679, 1.0
        %v696 = vadd.f32 %v680, 1.0
        %v697 = vadd.f32 %v681, 1.0
        %v698 = vadd.f32 %v682, 1.0
        %v699 = vadd.f32 %v683, 1.0
        %v700 = vadd.f32 %v684, 1.0
        %v701 = vadd.f32 %v685, 1.0
        %v702 = vadd.f32 %v686, 1.0
        %v703 = vadd.f32 %v687, 1.0
        %v704 = vadd.f32 %v688, 1.0
        %v705 = vadd.f32 %v689, 1.0
        %v706 = vadd.f32 %v690, 1.0
        %v707 = vadd.f32 %v691, 1.0
        %v708 = vadd.f32 %v692, 1.0
        %v709 = vmul.f32 %v581, %v693
        %v710 = vmul.f32 %v582, %v694
        %v711 = vmul.f32 %v583, %v695
        %v712 = vmul.f32 %v584, %v696
        %v713 = vmul.f32 %v585, %v697
        %v714 = vmul.f32 %v586, %v698
        %v715 = vmul.f32 %v587, %v699
        %v716 = vmul.f32 %v588, %v700
        %v717 = vmul.f32 %v589, %v701
        %v718 = vmul.f32 %v590, %v702
        %v719 = vmul.f32 %v591, %v703
        %v720 = vmul.f32 %v592, %v704
        %v721 = vmul.f32 %v593, %v705
        %v722 = vmul.f32 %v594, %v706
        %v723 = vmul.f32 %v595, %v707
        %v724 = vmul.f32 %v596, %v708
        %v725 = vld [vmem:[#allocation2] sm:$0xff]
        %v726 = vld [vmem:[#allocation2 + $0x8] sm:$0xff]
        %v727 = vld [vmem:[#allocation2 + $0x10] sm:$0xff]
        %v728 = vld [vmem:[#allocation2 + $0x18] sm:$0xff]
        %v729 = vld [vmem:[#allocation2 + $0x20] sm:$0xff]
        %v730 = vld [vmem:[#allocation2 + $0x28] sm:$0xff]
        %v731 = vld [vmem:[#allocation2 + $0x30] sm:$0xff]
        %v732 = vld [vmem:[#allocation2 + $0x38] sm:$0xff]
        %v733 = vpack.c.bf16 %v711, %v709
        %v734 = vpack.c.bf16 %v712, %v710
        %v735 = vpack.c.bf16 %v715, %v713
        %v736 = vpack.c.bf16 %v716, %v714
        %v737 = vpack.c.bf16 %v719, %v717
        %v738 = vpack.c.bf16 %v720, %v718
        %v739 = vpack.c.bf16 %v723, %v721
        %v740 = vpack.c.bf16 %v724, %v722
        %v741 = vld [vmem:[%s305] sm:$0xf]
        %v742 = vld [vmem:[%s305 + $0x4] sm:$0xf]
        %v743 = vld [vmem:[%s305 + $0x8] sm:$0xf]
        %v744 = vld [vmem:[%s305 + $0xc] sm:$0xf]
        %v745 = vld [vmem:[%s305 + $0x10] sm:$0xf]
        %v746 = vld [vmem:[%s305 + $0x14] sm:$0xf]
        %v747 = vld [vmem:[%s305 + $0x18] sm:$0xf]
        %v748 = vld [vmem:[%s305 + $0x1c] sm:$0xf]
        %v749 = vld [vmem:[%s305 + $0x20] sm:$0xf]
        %v750 = vld [vmem:[%s305 + $0x24] sm:$0xf]
        %v751 = vld [vmem:[%s305 + $0x28] sm:$0xf]
        %v752 = vld [vmem:[%s305 + $0x2c] sm:$0xf]
        %v753 = vld [vmem:[%s305 + $0x30] sm:$0xf]
        %v754 = vld [vmem:[%s305 + $0x34] sm:$0xf]
        %v755 = vld [vmem:[%s305 + $0x38] sm:$0xf]
        %v756 = vld [vmem:[%s305 + $0x3c] sm:$0xf]
        %v757 = vld [vmem:[%s305 + $0x40] sm:$0xf]
        %v758 = vld [vmem:[%s305 + $0x44] sm:$0xf]
        %v759 = vld [vmem:[%s305 + $0x48] sm:$0xf]
        %v760 = vld [vmem:[%s305 + $0x4c] sm:$0xf]
        %v761 = vld [vmem:[%s305 + $0x50] sm:$0xf]
        %v762 = vld [vmem:[%s305 + $0x54] sm:$0xf]
        %v763 = vld [vmem:[%s305 + $0x58] sm:$0xf]
        %v764 = vld [vmem:[%s305 + $0x5c] sm:$0xf]
        %v765 = vld [vmem:[%s305 + $0x60] sm:$0xf]
        %v766 = vld [vmem:[%s305 + $0x64] sm:$0xf]
        %v767 = vld [vmem:[%s305 + $0x68] sm:$0xf]
        %v768 = vld [vmem:[%s305 + $0x6c] sm:$0xf]
        %v769 = vld [vmem:[%s305 + $0x70] sm:$0xf]
        %v770 = vld [vmem:[%s305 + $0x74] sm:$0xf]
        %v771 = vld [vmem:[%s305 + $0x78] sm:$0xf]
        %v772 = vld [vmem:[%s305 + $0x7c] sm:$0xf]
        %v805 = vunpack.c.l.b16 %v741
        %v806 = vunpack.c.l.b16 %v742
        %v807 = vunpack.c.l.b16 %v743
        %v808 = vunpack.c.l.b16 %v744
        %v809 = vunpack.c.l.b16 %v745
        %v810 = vunpack.c.l.b16 %v746
        %v811 = vunpack.c.l.b16 %v747
        %v812 = vunpack.c.l.b16 %v748
        %v813 = vunpack.c.l.b16 %v749
        %v814 = vunpack.c.l.b16 %v750
        %v815 = vunpack.c.l.b16 %v751
        %v816 = vunpack.c.l.b16 %v752
        %v817 = vunpack.c.l.b16 %v753
        %v818 = vunpack.c.l.b16 %v754
        %v819 = vunpack.c.l.b16 %v755
        %v820 = vunpack.c.l.b16 %v756
        %v821 = vunpack.c.l.b16 %v757
        %v822 = vunpack.c.l.b16 %v758
        %v823 = vunpack.c.l.b16 %v759
        %v824 = vunpack.c.l.b16 %v760
        %v825 = vunpack.c.l.b16 %v761
        %v826 = vunpack.c.l.b16 %v762
        %v827 = vunpack.c.l.b16 %v763
        %v828 = vunpack.c.l.b16 %v764
        %v829 = vunpack.c.l.b16 %v765
        %v830 = vunpack.c.l.b16 %v766
        %v831 = vunpack.c.l.b16 %v767
        %v832 = vunpack.c.l.b16 %v768
        %v833 = vunpack.c.l.b16 %v769
        %v834 = vunpack.c.l.b16 %v770
        %v835 = vunpack.c.l.b16 %v771
        %v836 = vunpack.c.l.b16 %v772
        %v837 = vpack.c.b16 %v806, %v805
        %v838 = vpack.c.b16 %v808, %v807
        %v839 = vpack.c.b16 %v810, %v809
        %v840 = vpack.c.b16 %v812, %v811
        %v841 = vpack.c.b16 %v814, %v813
        %v842 = vpack.c.b16 %v816, %v815
        %v843 = vpack.c.b16 %v818, %v817
        %v844 = vpack.c.b16 %v820, %v819
        %v845 = vpack.c.b16 %v822, %v821
        %v846 = vpack.c.b16 %v824, %v823
        %v847 = vpack.c.b16 %v826, %v825
        %v848 = vpack.c.b16 %v828, %v827
        %v849 = vpack.c.b16 %v830, %v829
        %v850 = vpack.c.b16 %v832, %v831
        %v851 = vpack.c.b16 %v834, %v833
        %v852 = vpack.c.b16 %v836, %v835
        %869 = vmatprep.subr.bf16.mxu0 0
        %870 = vmatpush1.bf16.msra.mxu0 %v837
        %871 = vmatprep.subr.bf16.mxu0 0
        %872 = vmatpush1.bf16.msra.mxu0 %v838
        %873 = vmatprep.subr.bf16.mxu0 0
        %874 = vmatpush1.bf16.msra.mxu0 %v839
        %875 = vmatprep.subr.bf16.mxu0 0
        %876 = vmatpush1.bf16.msra.mxu0 %v840
        %877 = vmatprep.subr.bf16.mxu0 0
        %878 = vmatpush1.bf16.msra.mxu0 %v841
        %879 = vmatprep.subr.bf16.mxu0 0
        %880 = vmatpush1.bf16.msra.mxu0 %v842
        %881 = vmatprep.subr.bf16.mxu0 0
        %882 = vmatpush1.bf16.msra.mxu0 %v843
        %883 = vmatprep.subr.bf16.mxu0 0
        %884 = vmatpush1.bf16.msra.mxu0 %v844
        %885 = vmatprep.subr.bf16.mxu0 0
        %886 = vmatpush1.bf16.msra.mxu0 %v845
        %887 = vmatprep.subr.bf16.mxu0 0
        %888 = vmatpush1.bf16.msra.mxu0 %v846
        %889 = vmatprep.subr.bf16.mxu0 0
        %890 = vmatpush1.bf16.msra.mxu0 %v847
        %891 = vmatprep.subr.bf16.mxu0 0
        %892 = vmatpush1.bf16.msra.mxu0 %v848
        %893 = vmatprep.subr.bf16.mxu0 0
        %894 = vmatpush1.bf16.msra.mxu0 %v849
        %895 = vmatprep.subr.bf16.mxu0 0
        %896 = vmatpush1.bf16.msra.mxu0 %v850
        %897 = vmatprep.subr.bf16.mxu0 0
        %898 = vmatpush1.bf16.msra.mxu0 %v851
        %899 = vmatprep.subr.bf16.mxu0 0
        %900 = vmatpush1.bf16.msra.mxu0 %v852
        %901 = vmatprep.mubr.bf16.mxu0 %v734
        %902 = vmatmul.mubr.bf16.gmra.mrb[0].mxu0 %v733
        %v903 = vpop.f32.mrb[0].mxu0
        %v904 = vadd.f32 0.0, %v903
        %v905 = vpop.f32.mrb[0].mxu0
        %v906 = vpop.f32.mrb[0].mxu0
        %v907 = vadd.f32 0.0, %v906
        %v908 = vpop.f32.mrb[0].mxu0
        %909 = vmatprep.mubr.bf16.mxu0 %v736
        %910 = vmatmul.mubr.bf16.gmra.mrb[0].mxu0 %v735
        %v911 = vpop.f32.mrb[0].mxu0
        %v912 = vadd.f32 0.0, %v911
        %v913 = vpop.f32.mrb[0].mxu0
        %v914 = vpop.f32.mrb[0].mxu0
        %v915 = vadd.f32 0.0, %v914
        %v916 = vpop.f32.mrb[0].mxu0
        %917 = vmatprep.mubr.bf16.mxu0 %v738
        %918 = vmatmul.mubr.bf16.gmra.mrb[0].mxu0 %v737
        %v919 = vpop.f32.mrb[0].mxu0
        %v920 = vadd.f32 0.0, %v919
        %v921 = vpop.f32.mrb[0].mxu0
        %v922 = vpop.f32.mrb[0].mxu0
        %v923 = vadd.f32 0.0, %v922
        %v924 = vpop.f32.mrb[0].mxu0
        %925 = vmatprep.mubr.bf16.mxu0 %v740
        %926 = vmatmul.mubr.bf16.gmra.mrb[0].mxu0 %v739
        %v927 = vpop.f32.mrb[0].mxu0
        %v928 = vadd.f32 0.0, %v927
        %v929 = vpop.f32.mrb[0].mxu0
        %v930 = vpop.f32.mrb[0].mxu0
        %v931 = vadd.f32 0.0, %v930
        %v932 = vpop.f32.mrb[0].mxu0
        %933 = vdwg.mxu0
        %v934 = vadd.f32 %v725, %v904
        %v935 = vadd.f32 %v726, %v907
        %v936 = vadd.f32 %v727, %v912
        %v937 = vadd.f32 %v728, %v915
        %v938 = vadd.f32 %v729, %v920
        %v939 = vadd.f32 %v730, %v923
        %v940 = vadd.f32 %v731, %v928
        %v941 = vadd.f32 %v732, %v931
        %942 = vst [vmem:[#allocation2] sm:$0xff] %v934
        %943 = vst [vmem:[#allocation2 + $0x8] sm:$0xff] %v935
        %944 = vst [vmem:[#allocation2 + $0x10] sm:$0xff] %v936
        %945 = vst [vmem:[#allocation2 + $0x18] sm:$0xff] %v937
        %946 = vst [vmem:[#allocation2 + $0x20] sm:$0xff] %v938
        %947 = vst [vmem:[#allocation2 + $0x28] sm:$0xff] %v939
        %948 = vst [vmem:[#allocation2 + $0x30] sm:$0xff] %v940
        %949 = vst [vmem:[#allocation2 + $0x38] sm:$0xff] %v941
        %p950 = scmp.eq.s32.totalorder %s30, 1
        // Predicated region
        $region57: #{tpu_custom_call.1} parent=39 // pred_check
          %p951 = pneg %p950
        $region58: #{tpu_custom_call.1} parent=39 // pred_check_branch
          %953 = sbr.rel (%p951) target = $region60
        $region59: #{tpu_custom_call.1} parent=39 // pred_region
          %v954 = vld [vmem:[#allocation2] sm:$0xff]
          %v955 = vld [vmem:[#allocation2 + $0x8] sm:$0xff]
          %v956 = vld [vmem:[#allocation2 + $0x10] sm:$0xff]
          %v957 = vld [vmem:[#allocation2 + $0x18] sm:$0xff]
          %v958 = vld [vmem:[#allocation2 + $0x20] sm:$0xff]
          %v959 = vld [vmem:[#allocation2 + $0x28] sm:$0xff]
          %v960 = vld [vmem:[#allocation2 + $0x30] sm:$0xff]
          %v961 = vld [vmem:[#allocation2 + $0x38] sm:$0xff]
          %v962 = vld [vmem:[%s4] sm:$0x1]
          %v964 = vlaneseq
          %v965 = vshrl.u32 %v964, 7
          %v966 = vsub.s32 0, %v965
          %v967 = vrot.slane %v962, %v966
          %v969 = vadd.f32 %v954, %v967
          %v970 = vadd.f32 %v955, %v967
          %v971 = vadd.f32 %v956, %v967
          %v972 = vadd.f32 %v957, %v967
          %v973 = vadd.f32 %v958, %v967
          %v974 = vadd.f32 %v959, %v967
          %v975 = vadd.f32 %v960, %v967
          %v976 = vadd.f32 %v961, %v967
          %977 = vst [vmem:[%s345] sm:$0xff] %v969
          %978 = vst [vmem:[%s345 + $0x8] sm:$0xff] %v970
          %979 = vst [vmem:[%s345 + $0x10] sm:$0xff] %v971
          %980 = vst [vmem:[%s345 + $0x18] sm:$0xff] %v972
          %981 = vst [vmem:[%s345 + $0x20] sm:$0xff] %v973
          %982 = vst [vmem:[%s345 + $0x28] sm:$0xff] %v974
          %983 = vst [vmem:[%s345 + $0x30] sm:$0xff] %v975
          %984 = vst [vmem:[%s345 + $0x38] sm:$0xff] %v976
        $region60: #{tpu_custom_call.1} parent=39 // pred_fallthru
          _
        %s985 = sand.u32 %s170, 1
        %s986 = scalar_lea.sflag [#allocation5], %s985
        %s987 = sand.u32 %s170, 1
        %s988 = smul.addr %s987, 64
        %s989 = scalar_lea.vmem [#allocation9], %s988
        // Predicated region
        $region61: #{tpu_custom_call.1} parent=39 // pred_check
          %p990 = pneg %p180
        $region62: #{tpu_custom_call.1} parent=39 // pred_check_branch
          %992 = sbr.rel (%p990) target = $region64
        $region63: #{tpu_custom_call.1} parent=39 // pred_region
          %s993 = smul.u32 8, %s29
          %s995 = ssub.s32 1024, 1024
          %996 = vsyncadd %s986, %s995
          %s997 = smul.addr %s993, 128
          %s998 = scalar_lea.hbm %s5, %s997
          %s999 = sshll.u32 %s989, 4
          %s1000 = int_to_ptr.vmem [resolvable:$true] %s999
          %1005 = dma.vmem_to_hbm [thread:$0]  %s1000, 1024, %s998, %s986, 128, 128, 8
        $region64: #{tpu_custom_call.1} parent=39 // pred_fallthru
          _
      $region40: #{tpu_custom_call.1} parent=5 // pred_fallthru
        _
      %p1006 = scmp.le.s32.totalorder 2, %s20
      // Predicated region
      $region65: #{tpu_custom_call.1} parent=5 // pred_check
        %p1007 = pneg %p1006
      $region66: #{tpu_custom_call.1} parent=5 // pred_check_branch
        %1009 = sbr.rel (%p1007) target = $region68
      $region67: #{tpu_custom_call.1} parent=5 // pred_region
        %s1010 = ssub.s32 %s20, 2
        // Predicated region
        $region69: #{tpu_custom_call.1} parent=67 // pred_check
          %p1011 = pneg %p186
        $region70: #{tpu_custom_call.1} parent=67 // pred_check_branch
          %1013 = sbr.rel (%p1011) target = $region72
        $region71: #{tpu_custom_call.1} parent=67 // pred_region
          %s1014 = sand.u32 %s171, 1
          %s1015 = scalar_lea.sflag [#allocation5], %s1014
          %s1016 = sand.u32 %s171, 1
          %s1017 = smul.addr %s1016, 64
          %s1018 = scalar_lea.vmem [#allocation9], %s1017
          %1019 = dma.done %s1015, 1024
        $region72: #{tpu_custom_call.1} parent=67 // pred_fallthru
          _
      $region68: #{tpu_custom_call.1} parent=5 // pred_fallthru
        _
    $region6: #{tpu_custom_call.1} parent=1 // loop_footer
      %s24 = sadd.s32 1, %s20
    $region7: #{tpu_custom_call.1} parent=1 // loop_footer_branch
      %19 = sbr.rel target = $region3
    $region8: #{tpu_custom_call.1} parent=1 // loop_exit
      _
    %1020 = vsyncpa [#allocation4], 1
    %s1021 = scalar_lea.sflag [#allocation4], 1
    %1022 = vsyncpa %s1021, 1
    %1023 = vsyncpa [#allocation7], 1
    %s1024 = scalar_lea.sflag [#allocation7], 1
    %1025 = vsyncpa %s1024, 1
    %1026 = vsyncpa [#allocation5], 1
    %s1027 = scalar_lea.sflag [#allocation5], 1
    %1028 = vsyncpa %s1027, 1

</llo_original>
